<compile_context>
chip_gen: v5e
topology: v5e:2x2
jax: 0.10.0
libtpu: 0.0.40
codegen_flags: <defaults>
</compile_context>

<pallas_src>
import jax
import jax.numpy as jnp
from jax.experimental import pallas as pl
from jax.experimental.pallas import tpu as pltpu

_BN_EPS = 1e-5


def _round_up(x, m):
    return (x + m - 1) // m * m


def _pick_row_block(pw):
    """Largest MXU-friendly row tile (<=256) that divides, or singly covers, Ho*Wo."""
    for cand in (256, 128, 64, 32, 16, 8):
        if pw % cand == 0:
            return cand
    return _round_up(pw, 8)              # odd sizes: one zero-padded tile


# ----------------------------------------------------------------------------- kernels
def _conv_stats_kernel(p_ref, w_ref, y_ref, s_ref):
    """Pass 1: one dense MXU matmul (im2col patches x weights) + BN partial sums.

    p_ref: (1, rows, KKCp)   bf16  im2col patch rows for this (batch, row-tile)
    w_ref: (KKCp, Cp)        bf16  conv weights, row = (ki*K + kj)*Cin + c, col = Cout
    y_ref: (1, rows, Cp)     bf16  conv output (lane-dense, Cout in lanes)
    s_ref: (1, 1, 1, 2*Cp)   f32   per-tile [sum | sum-of-squares] packed along lanes
    """
    y = jnp.dot(p_ref[0], w_ref[...], preferred_element_type=jnp.float32)
    y_ref[0] = y.astype(y_ref.dtype)
    s1 = jnp.sum(y, axis=0, keepdims=True)          # (1, Cp)
    s2 = jnp.sum(y * y, axis=0, keepdims=True)      # (1, Cp)
    s_ref[0, 0] = jnp.concatenate([s1, s2], axis=1)  # (1, 2*Cp) single full-lane store


def _bn_apply_kernel(y_ref, scale_ref, shift_ref, o_ref):
    """Pass 2: pure elementwise folded-BatchNorm affine (no conv recompute)."""
    y = y_ref[0].astype(jnp.float32)
    o_ref[0] = (y * scale_ref[...] + shift_ref[...]).astype(o_ref.dtype)


# ----------------------------------------------------------------------------- wrapper
def overlap_patch_embed(x_nchw, params, *, stride=4, channels_last_output=False):
    """Forward of OverlapPatchEmbed. Input: NCHW f32. Returns (out, Ho, Wo)."""
    N, Cin, H, W = x_nchw.shape
    weight = params['proj_w']                 # (Cout, Cin, K, K) — torch Conv2d layout
    gamma = params['bn_gamma']
    beta = params['bn_beta']
    # params['proj_b'] is intentionally unused: training-mode BN cancels any
    # per-channel constant bias exactly (the f32 reference keeps it and matches).
    Cout, _, K, _ = weight.shape
    pad = K // 2
    Ho = (H + 2 * pad - K) // stride + 1
    Wo = (W + 2 * pad - K) // stride + 1

    KKC = K * K * Cin
    KKCp = _round_up(KKC, 16)                 # bf16-native sublane multiple for weights
    Cp = _round_up(Cout, 128)                 # lane-dense output channels
    PW = Ho * Wo
    row_block = _pick_row_block(PW)
    PWp = _round_up(PW, row_block)
    nt = PWp // row_block

    # ---- layout plumbing (zero FLOPs) at the NCHW module boundary ---------------------
    x = jnp.transpose(x_nchw, (0, 2, 3, 1)).astype(jnp.bfloat16)        # NHWC, bf16
    xp = jnp.pad(x, ((0, 0), (pad, pad), (pad, pad), (0, 0)))
    r_idx = stride * jnp.arange(Ho)[:, None] + jnp.arange(K)[None, :]   # (Ho, K)
    c_idx = stride * jnp.arange(Wo)[:, None] + jnp.arange(K)[None, :]   # (Wo, K)
    patches = xp[:, r_idx[:, None, :, None], c_idx[None, :, None, :], :]  # (N,Ho,Wo,K,K,Cin)
    patches = patches.reshape(N, PW, KKC)
    patches = jnp.pad(patches, ((0, 0), (0, PWp - PW), (0, KKCp - KKC)))

    wm = jnp.transpose(weight, (2, 3, 1, 0)).reshape(KKC, Cout).astype(jnp.bfloat16)
    wm = jnp.pad(wm, ((0, KKCp - KKC), (0, Cp - Cout)))                 # ~40 KB, resident

    cparams = pltpu.CompilerParams(dimension_semantics=("parallel", "parallel"))

    # ---- pass 1: conv (one MXU matmul per tile) + per-tile BN partial sums ------------
    y_conv, stats = pl.pallas_call(
        _conv_stats_kernel,
        out_shape=(jax.ShapeDtypeStruct((N, PWp, Cp), jnp.bfloat16),
                   jax.ShapeDtypeStruct((N, nt, 1, 2 * Cp), jnp.float32)),
        grid_spec=pltpu.PrefetchScalarGridSpec(
            num_scalar_prefetch=0,
            grid=(N, nt),
            in_specs=[pl.BlockSpec((1, row_block, KKCp), lambda b, t: (b, t, 0)),
                      pl.BlockSpec((KKCp, Cp), lambda b, t: (0, 0))],
            out_specs=(pl.BlockSpec((1, row_block, Cp), lambda b, t: (b, t, 0)),
                       pl.BlockSpec((1, 1, 1, 2 * Cp), lambda b, t: (b, t, 0, 0)))),
        compiler_params=cparams,
    )(patches, wm)

    # ---- fold batch statistics into a per-channel scale/shift (tiny, XLA) -------------
    # Zero-padded rows / channels / contraction columns contribute exactly 0 to both sums.
    s = jnp.sum(stats, axis=(0, 1, 2))                                  # (2*Cp,)
    cnt = jnp.float32(N * Ho * Wo)
    mean = s[:Cp] / cnt
    var = jnp.maximum(s[Cp:] / cnt - mean * mean, 0.0)                  # biased (training BN)
    gamma_p = jnp.pad(gamma.astype(jnp.float32), (0, Cp - Cout))
    beta_p = jnp.pad(beta.astype(jnp.float32), (0, Cp - Cout))
    inv = gamma_p * jax.lax.rsqrt(var + _BN_EPS)
    scale = inv.reshape(1, Cp)
    shift = (beta_p - mean * inv).reshape(1, Cp)

    # ---- pass 2: elementwise scale/shift, lane-dense bf16 output ----------------------
    out = pl.pallas_call(
        _bn_apply_kernel,
        out_shape=jax.ShapeDtypeStruct((N, PWp, Cp), jnp.bfloat16),
        grid_spec=pltpu.PrefetchScalarGridSpec(
            num_scalar_prefetch=0,
            grid=(N, nt),
            in_specs=[pl.BlockSpec((1, row_block, Cp), lambda b, t: (b, t, 0)),
                      pl.BlockSpec((1, Cp), lambda b, t: (0, 0)),
                      pl.BlockSpec((1, Cp), lambda b, t: (0, 0))],
            out_specs=pl.BlockSpec((1, row_block, Cp), lambda b, t: (b, t, 0))),
        compiler_params=cparams,
    )(y_conv, scale, shift)

    out = out[:, :PW, :Cout].reshape(N, Ho, Wo, Cout)
    if channels_last_output:
        return out, Ho, Wo                              # bf16, chain-friendly layout
    out_nchw = jnp.transpose(out, (0, 3, 1, 2)).astype(jnp.float32)     # PyTorch interface
    return out_nchw, Ho, Wo


# ----------------------------------------------------------------------------- params / reference
def init_params(key, in_chans=3, embed_dim=128, patch_size=7):
    """Deterministic synthetic parameters matching the module's _init_weights."""
    fan_out = patch_size * patch_size * embed_dim               # groups == 1
    std = (2.0 / fan_out) ** 0.5
    w = std * jax.random.normal(
        key, (embed_dim, in_chans, patch_size, patch_size), jnp.float32)
    return {
        'proj_w': w,
        'proj_b': jnp.zeros((embed_dim,), jnp.float32),
        'bn_gamma': jnp.ones((embed_dim,), jnp.float32),
        'bn_beta': jnp.zeros((embed_dim,), jnp.float32),
    }


def _reference(x_nchw, params, *, stride=4):
    """Pure-JAX (f32) reference: Conv2d (with bias) + training-mode BatchNorm2d."""
    w = params['proj_w']
    K = w.shape[-1]
    pad = K // 2
    y = jax.lax.conv_general_dilated(
        x_nchw, w, window_strides=(stride, stride),
        padding=((pad, pad), (pad, pad)),
        dimension_numbers=('NCHW', 'OIHW', 'NCHW'))
    y = y + params['proj_b'].reshape(1, -1, 1, 1)
    mean = jnp.mean(y, axis=(0, 2, 3), keepdims=True)
    var = jnp.mean((y - mean) ** 2, axis=(0, 2, 3), keepdims=True)
    g = params['bn_gamma'].reshape(1, -1, 1, 1)
    b = params['bn_beta'].reshape(1, -1, 1, 1)
    return (y - mean) / jnp.sqrt(var + _BN_EPS) * g + b


if __name__ == "__main__":
    key = jax.random.PRNGKey(0)
    kx, kw = jax.random.split(key)

    N, Cin, H, W = 2, 3, 64, 64
    embed_dim = 128                       # one full vreg of lanes -> unmasked stores

    x = jax.random.normal(kx, (N, Cin, H, W), jnp.float32)
    params = init_params(kw, in_chans=Cin, embed_dim=embed_dim, patch_size=7)

    y, Ho, Wo = overlap_patch_embed(x, params)
    y = jax.block_until_ready(y)

    assert y.shape == (N, embed_dim, Ho, Wo), y.shape
    assert bool(jnp.all(jnp.isfinite(y)))

    ref = _reference(x, params)
    err = float(jnp.max(jnp.abs(y - ref)))
    assert err < 0.1, f"max abs error vs f32 reference too large: {err}"

    print("KERNEL_OK")
</pallas_src>

<mosaic_0001>
module attributes {stable_mosaic.version = 11 : i64} {
  func.func @_conv_stats_kernel(%arg0: i32, %arg1: i32, %arg2: memref<1x256x160xbf16, #tpu.memory_space<vmem>>, %arg3: memref<160x128xbf16, #tpu.memory_space<vmem>>, %arg4: memref<1x256x128xbf16, #tpu.memory_space<vmem>>, %arg5: memref<1x1x1x256xf32, #tpu.memory_space<vmem>>) attributes {dimension_semantics = [#tpu.dimension_semantics<parallel>, #tpu.dimension_semantics<parallel>], iteration_bounds = array<i64: 2, 1>, scalar_prefetch = 0 : i64, scratch_operands = 0 : i64, tpu.core_type = #tpu.core_type<tc>, window_params = [{transform_indices = @transform_0, window_bounds = array<i64: 1, 256, 160>}, {pipeline_mode = #tpu.pipeline_mode<synchronous>, transform_indices = @transform_1, window_bounds = array<i64: 160, 128>}, {transform_indices = @transform_2, window_bounds = array<i64: 1, 256, 128>}, {transform_indices = @transform_3, window_bounds = array<i64: 1, 1, 1, 256>}]} {
    %c0 = arith.constant 0 : index
    %c0_0 = arith.constant 0 : index
    %c0_1 = arith.constant 0 : index
    %0 = vector.load %arg2[%c0, %c0_0, %c0_1] : memref<1x256x160xbf16, #tpu.memory_space<vmem>>, vector<1x256x160xbf16>
    %1 = vector.shape_cast %0 : vector<1x256x160xbf16> to vector<256x160xbf16>
    %c0_2 = arith.constant 0 : index
    %c0_3 = arith.constant 0 : index
    %2 = vector.load %arg3[%c0_2, %c0_3] : memref<160x128xbf16, #tpu.memory_space<vmem>>, vector<160x128xbf16>
    %cst = arith.constant dense<0.000000e+00> : vector<256x128xf32>
    %3 = tpu.matmul %1, %2, %cst {dimension_numbers = #tpu.dot_dimension_numbers<[1], [0], [0], [1], [0, 0, 1, 1], [], []>} : vector<256x160xbf16>, vector<160x128xbf16>, vector<256x128xf32> -> vector<256x128xf32>
    %4 = arith.truncf %3 : vector<256x128xf32> to vector<256x128xbf16>
    %c0_4 = arith.constant 0 : index
    %c0_5 = arith.constant 0 : index
    %c0_6 = arith.constant 0 : index
    %5 = vector.load %arg4[%c0_4, %c0_5, %c0_6] : memref<1x256x128xbf16, #tpu.memory_space<vmem>>, vector<1x256x128xbf16>
    %6 = vector.shape_cast %5 : vector<1x256x128xbf16> to vector<256x128xbf16>
    %7 = vector.shape_cast %4 : vector<256x128xbf16> to vector<1x256x128xbf16>
    tpu.vector_store %arg4[%c0_4, %c0_5, %c0_6], %7 {strides = array<i32>} : memref<1x256x128xbf16, #tpu.memory_space<vmem>>, vector<1x256x128xbf16>,
    %cst_7 = arith.constant dense<0.000000e+00> : vector<128xf32>
    %8 = vector.multi_reduction <add>, %3, %cst_7 [0] : vector<256x128xf32> to vector<128xf32>
    %9 = vector.shape_cast %8 : vector<128xf32> to vector<1x128xf32>
    %10 = arith.mulf %3, %3 : vector<256x128xf32>
    %cst_8 = arith.constant dense<0.000000e+00> : vector<128xf32>
    %11 = vector.multi_reduction <add>, %10, %cst_8 [0] : vector<256x128xf32> to vector<128xf32>
    %12 = vector.shape_cast %11 : vector<128xf32> to vector<1x128xf32>
    %13 = tpu.concatenate %9, %12 in 1 : vector<1x128xf32>, vector<1x128xf32> -> vector<1x256xf32>
    %c0_9 = arith.constant 0 : index
    %c0_10 = arith.constant 0 : index
    %c0_11 = arith.constant 0 : index
    %c0_12 = arith.constant 0 : index
    %14 = vector.load %arg5[%c0_9, %c0_10, %c0_11, %c0_12] : memref<1x1x1x256xf32, #tpu.memory_space<vmem>>, vector<1x1x1x256xf32>
    %15 = vector.shape_cast %14 : vector<1x1x1x256xf32> to vector<1x256xf32>
    %16 = vector.shape_cast %13 : vector<1x256xf32> to vector<1x1x1x256xf32>
    tpu.vector_store %arg5[%c0_9, %c0_10, %c0_11, %c0_12], %16 {strides = array<i32>} : memref<1x1x1x256xf32, #tpu.memory_space<vmem>>, vector<1x1x1x256xf32>,
    return
  }
  func.func @transform_0(%arg0: i32, %arg1: i32) -> (i32, i32, i32) {
    %c0_i32 = arith.constant 0 : i32
    %c0_i32_0 = arith.constant 0 : i32
    return %arg0, %arg1, %c0_i32 : i32, i32, i32
  }
  func.func @transform_1(%arg0: i32, %arg1: i32) -> (i32, i32) {
    %c0_i32 = arith.constant 0 : i32
    %c0_i32_0 = arith.constant 0 : i32
    %c0_i32_1 = arith.constant 0 : i32
    return %c0_i32, %c0_i32_0 : i32, i32
  }
  func.func @transform_2(%arg0: i32, %arg1: i32) -> (i32, i32, i32) {
    %c0_i32 = arith.constant 0 : i32
    %c0_i32_0 = arith.constant 0 : i32
    return %arg0, %arg1, %c0_i32 : i32, i32, i32
  }
  func.func @transform_3(%arg0: i32, %arg1: i32) -> (i32, i32, i32, i32) {
    %c0_i32 = arith.constant 0 : i32
    %c0_i32_0 = arith.constant 0 : i32
    %c0_i32_1 = arith.constant 0 : i32
    return %arg0, %arg1, %c0_i32, %c0_i32_0 : i32, i32, i32, i32
  }
}

</mosaic_0001>

<llo_original>
// kernel: tpu_custom_call.1
$region0: #{tpu_custom_call.1}
  #allocation0 [shape = 'u32[]', space=smem, size = 0x4, offset = 0x4, fixed_abs, tag = 'smem constant byte address 0x4 - core index']
  #allocation1 [shape = 'u32[72,128]{1,0:T(1,128)}', space=vmem, size = 0x9000, scoped, tag = 'internal scratch']
  %s0 = inlined_call_operand.vmem [shape: bf16[2,256,160], index: 0, kind: input, shape index: {}]
  %s1 = inlined_call_operand.vmem [shape: bf16[160,128], index: 1, kind: input, shape index: {}]
  %s2 = inlined_call_operand.hbm [shape: bf16[2,256,128], index: 2, kind: output, shape index: {0}]
  %s3 = inlined_call_operand.hbm [shape: f32[2,1,1,256], index: 3, kind: output, shape index: {1}]
  %4 = xla_tuple %s2, %s3
  %s5 = sld [smem:[#allocation0]]
  $region49: #{tpu_custom_call.1} parent=0
    _
  %s7 = ssub.s32 1, %s5
  %s8 = scalar_select 0, %s7, %s5
  $region1: #{tpu_custom_call.1} parent=0
    #allocation2 [shape = 'u8[131072]{0}', space=vmem, size = 0x20000, scoped, tag = 'output window, operand 0']
    #allocation3 [shape = 's32[2]{0}', space=sflag, size = 0x8, scoped, tag = 'scoped memory for tpu_custom_call.1']
    #allocation4 [shape = 'u8[2048]{0}', space=vmem, size = 0x800, scoped, tag = 'output window, operand 1']
    #allocation5 [shape = 's32[2]{0}', space=sflag, size = 0x8, scoped, tag = 'scoped memory for tpu_custom_call.1']
    %9 = vsyncpa [#allocation3], 0
    %s10 = scalar_lea.sflag [#allocation3], 1
    %11 = vsyncpa %s10, 0
    %12 = vsyncpa [#allocation5], 0
    %s13 = scalar_lea.sflag [#allocation5], 1
    %14 = vsyncpa %s13, 0
    loop: start=0, step=1, limit=4
    $region2: #{tpu_custom_call.1} parent=1 // loop_pre_header
      _
    $region3: #{tpu_custom_call.1} parent=1 // loop_header
      %s16 = sphi 0, %s20
      %p17 = scmp.ge.s32.totalorder %s16, 4
      %s23 = sphi 0, %s35
      %s24 = sphi 0, %s31
      %s25 = sphi 0, %s23
      %s26 = sphi 0, %s24
      %s27 = sphi 0, %s25
      %s28 = sphi 0, %s26
      %s40 = sphi 0, %s42
      %s43 = sphi 0, %s40
      %s44 = sphi 0, %s43
      %s60 = sphi 0, %s44
      %s64 = sphi 0, %s64
      %s66 = sphi 0, %s64
      %s67 = sphi 0, %s66
      %s81 = sphi 0, %s67
      %s89 = sphi 0, %s91
      %s92 = sphi 0, %s89
      %s93 = sphi 0, %s92
      %s109 = sphi 0, %s93
      %s117 = sphi 0, %s119
      %s120 = sphi 0, %s117
      %s121 = sphi 0, %s120
      %s137 = sphi 0, %s121
    $region4: #{tpu_custom_call.1} parent=1 // loop_header_branch
      %19 = sbr.rel (%p17) target = $region8
    $region5: #{tpu_custom_call.1} parent=1 // loop_body
      %s21 = ssub.s32 %s16, 1
      %s22 = ssub.s32 %s16, 2
      %s29 = sadd.s32 1, %s24
      %p30 = scmp.ge.s32.totalorder %s29, 1
      %s31 = scalar_select %p30, 0, %s29
      %s32 = sadd.s32 1, %s23
      %s33 = scalar_select %p30, %s32, %s23
      %p34 = scmp.ge.s32.totalorder %s33, 2
      %s35 = scalar_select %p34, 0, %s33
      %s36 = ssub.s32 %s23, %s35
      %s37 = ssub.s32 %s24, %s31
      %s38 = sor.u32 %s36, %s37
      %p39 = scmp.eq.s32.totalorder %s38, 0
      %s41 = sadd.s32 %s40, 1
      %s42 = scalar_select %p39, %s40, %s41
      %p45 = pneg %p39
      %p46 = scmp.eq.s32.totalorder %s16, 1
      %p47 = por %p45, %p46
      %p48 = scmp.ne.s32.totalorder %s40, %s43
      %p49 = scmp.eq.s32.totalorder %s16, 0
      %p50 = por %p48, %p49
      %p51 = scmp.ne.s32.totalorder %s40, %s43
      %p52 = scmp.eq.s32.totalorder %s21, 1
      %p53 = por %p51, %p52
      %p54 = scmp.ne.s32.totalorder %s43, %s44
      %p55 = scmp.eq.s32.totalorder %s21, 0
      %p56 = por %p54, %p55
      %p57 = scmp.ne.s32.totalorder %s43, %s44
      %p58 = scmp.eq.s32.totalorder %s22, 1
      %p59 = por %p57, %p58
      %p61 = scmp.ne.s32.totalorder %s44, %s60
      %p62 = scmp.eq.s32.totalorder %s22, 0
      %p63 = por %p61, %p62
      %s65 = sadd.s32 %s64, 1
      %p68 = scmp.eq.s32.totalorder %s16, 1
      %p69 = scmp.ne.s32.totalorder %s64, %s66
      %p70 = scmp.eq.s32.totalorder %s16, 0
      %p71 = por %p69, %p70
      %p72 = scmp.ne.s32.totalorder %s64, %s66
      %p73 = scmp.eq.s32.totalorder %s21, 1
      %p74 = por %p72, %p73
      %p75 = scmp.ne.s32.totalorder %s66, %s67
      %p76 = scmp.eq.s32.totalorder %s21, 0
      %p77 = por %p75, %p76
      %p78 = scmp.ne.s32.totalorder %s66, %s67
      %p79 = scmp.eq.s32.totalorder %s22, 1
      %p80 = por %p78, %p79
      %p82 = scmp.ne.s32.totalorder %s67, %s81
      %p83 = scmp.eq.s32.totalorder %s22, 0
      %p84 = por %p82, %p83
      %s85 = ssub.s32 %s23, %s35
      %s86 = ssub.s32 %s24, %s31
      %s87 = sor.u32 %s85, %s86
      %p88 = scmp.eq.s32.totalorder %s87, 0
      %s90 = sadd.s32 %s89, 1
      %s91 = scalar_select %p88, %s89, %s90
      %p94 = pneg %p88
      %p95 = scmp.eq.s32.totalorder %s16, 1
      %p96 = por %p94, %p95
      %p97 = scmp.ne.s32.totalorder %s89, %s92
      %p98 = scmp.eq.s32.totalorder %s16, 0
      %p99 = por %p97, %p98
      %p100 = scmp.ne.s32.totalorder %s89, %s92
      %p101 = scmp.eq.s32.totalorder %s21, 1
      %p102 = por %p100, %p101
      %p103 = scmp.ne.s32.totalorder %s92, %s93
      %p104 = scmp.eq.s32.totalorder %s21, 0
      %p105 = por %p103, %p104
      %p106 = scmp.ne.s32.totalorder %s92, %s93
      %p107 = scmp.eq.s32.totalorder %s22, 1
      %p108 = por %p106, %p107
      %p110 = scmp.ne.s32.totalorder %s93, %s109
      %p111 = scmp.eq.s32.totalorder %s22, 0
      %p112 = por %p110, %p111
      %s113 = ssub.s32 %s23, %s35
      %s114 = ssub.s32 %s24, %s31
      %s115 = sor.u32 %s113, %s114
      %p116 = scmp.eq.s32.totalorder %s115, 0
      %s118 = sadd.s32 %s117, 1
      %s119 = scalar_select %p116, %s117, %s118
      %p122 = pneg %p116
      %p123 = scmp.eq.s32.totalorder %s16, 1
      %p124 = por %p122, %p123
      %p125 = scmp.ne.s32.totalorder %s117, %s120
      %p126 = scmp.eq.s32.totalorder %s16, 0
      %p127 = por %p125, %p126
      %p128 = scmp.ne.s32.totalorder %s117, %s120
      %p129 = scmp.eq.s32.totalorder %s21, 1
      %p130 = por %p128, %p129
      %p131 = scmp.ne.s32.totalorder %s120, %s121
      %p132 = scmp.eq.s32.totalorder %s21, 0
      %p133 = por %p131, %p132
      %p134 = scmp.ne.s32.totalorder %s120, %s121
      %p135 = scmp.eq.s32.totalorder %s22, 1
      %p136 = por %p134, %p135
      %p138 = scmp.ne.s32.totalorder %s121, %s137
      %p139 = scmp.eq.s32.totalorder %s22, 0
      %p140 = por %p138, %p139
      %p141 = scmp.le.s32.totalorder 1, %s16
      %p142 = scmp.lt.s32.totalorder %s16, 3
      %p143 = pnand %p141, %p142
      %p144 = pneg %p143
      // Predicated region
      $region9: #{tpu_custom_call.1} parent=5 // pred_check
        _
      $region10: #{tpu_custom_call.1} parent=5 // pred_check_branch
        %146 = sbr.rel (%p143) target = $region12
      $region11: #{tpu_custom_call.1} parent=5 // pred_region
        %s147 = ssub.s32 %s16, 1
        // Predicated region
        $region13: #{tpu_custom_call.1} parent=11 // pred_check
          %p148 = pneg %p77
        $region14: #{tpu_custom_call.1} parent=11 // pred_check_branch
          %150 = sbr.rel (%p148) target = $region16
        $region15: #{tpu_custom_call.1} parent=11 // pred_region
          _
        $region16: #{tpu_custom_call.1} parent=11 // pred_fallthru
          _
      $region12: #{tpu_custom_call.1} parent=5 // pred_fallthru
        _
      %p151 = scmp.lt.s32.totalorder %s16, 2
      // Predicated region
      $region17: #{tpu_custom_call.1} parent=5 // pred_check
        %p152 = pneg %p151
      $region18: #{tpu_custom_call.1} parent=5 // pred_check_branch
        %154 = sbr.rel (%p152) target = $region20
      $region19: #{tpu_custom_call.1} parent=5 // pred_region
        // Predicated region
        $region21: #{tpu_custom_call.1} parent=19 // pred_check
          %p155 = pneg %p50
        $region22: #{tpu_custom_call.1} parent=19 // pred_check_branch
          %157 = sbr.rel (%p155) target = $region24
        $region23: #{tpu_custom_call.1} parent=19 // pred_region
          %s158 = smul.u32 32, %s24
          %p159 = scmp.lt.s32.totalorder %s23, 1
          %s160 = scalar_select %p159, %s23, 1
          %p161 = scmp.lt.s32.totalorder %s158, 31
          %s162 = scalar_select %p161, %s158, 31
          %s163 = smul.addr %s162, 2
          %s164 = smul.addr %s160, 64
          %s165 = sadd.s32 %s163, %s164
          %s166 = smul.addr %s165, 4
          %s167 = scalar_lea.vmem %s0, %s166
          %s168 = smul.u32 32, %s24
        $region24: #{tpu_custom_call.1} parent=19 // pred_fallthru
          _
      $region20: #{tpu_custom_call.1} parent=5 // pred_fallthru
        _
      %p169 = scmp.le.s32.totalorder 1, %s16
      %p170 = scmp.lt.s32.totalorder %s16, 3
      %p171 = pnand %p169, %p170
      %p172 = pneg %p171
      // Predicated region
      $region25: #{tpu_custom_call.1} parent=5 // pred_check
        _
      $region26: #{tpu_custom_call.1} parent=5 // pred_check_branch
        %174 = sbr.rel (%p171) target = $region28
      $region27: #{tpu_custom_call.1} parent=5 // pred_region
        %s175 = ssub.s32 %s16, 1
        %s176 = smul.u32 32, %s26
        %p177 = scmp.lt.s32.totalorder %s25, 1
        %s178 = scalar_select %p177, %s25, 1
        %p179 = scmp.lt.s32.totalorder %s176, 31
        %s180 = scalar_select %p179, %s176, 31
        %s181 = smul.addr %s180, 2
        %s182 = smul.addr %s178, 64
        %s183 = sadd.s32 %s181, %s182
        %s184 = smul.addr %s183, 4
        %s185 = scalar_lea.vmem %s0, %s184
        %p186 = pneg %p56
        %p187 = pneg %p53
        %p188 = pneg %p77
        %p189 = pneg %p74
        %p190 = pneg %p105
        %p191 = pneg %p102
        %s192 = sand.u32 %s92, 1
        %s193 = scalar_lea.sflag [#allocation3], %s192
        %s194 = sand.u32 %s92, 1
        %s195 = smul.addr %s194, 128
        %s196 = scalar_lea.vmem [#allocation2], %s195
        %p197 = pneg %p133
        %p198 = pneg %p130
        %s199 = sand.u32 %s120, 1
        %s200 = scalar_lea.sflag [#allocation5], %s199
        %s201 = sand.u32 %s120, 1
        %s202 = smul.addr %s201, 2
        %s203 = scalar_lea.vmem [#allocation4], %s202
        %s204 = smul.u32 32, %s26
        %p205 = scmp.lt.s32.totalorder %s25, 1
        %s206 = scalar_select %p205, %s25, 1
        %p207 = scmp.lt.s32.totalorder %s204, 31
        %s208 = scalar_select %p207, %s204, 31
        %s209 = smul.addr %s208, 2
        %s210 = smul.addr %s206, 64
        %s211 = sadd.s32 %s209, %s210
        %s212 = smul.addr %s211, 4
        %s213 = scalar_lea.vmem %s0, %s212
        %s214 = smul.u32 32, %s26
        %s215 = smul.u32 32, %s26
        %v217 = vld [vmem:[%s213] sm:$0xff]
        %v218 = vld [vmem:[%s213 + $0x8] sm:$0xff]
        %v219 = vld [vmem:[%s213 + $0x10] sm:$0xff]
        %v220 = vld [vmem:[%s213 + $0x18] sm:$0xff]
        %v221 = vld [vmem:[%s213 + $0x20] sm:$0xff]
        %v222 = vld [vmem:[%s213 + $0x28] sm:$0xff]
        %v223 = vld [vmem:[%s213 + $0x30] sm:$0xff]
        %v224 = vld [vmem:[%s213 + $0x38] sm:$0xff]
        %v225 = vld [vmem:[%s213 + $0x40] sm:$0xff]
        %v226 = vld [vmem:[%s213 + $0x48] sm:$0xff]
        %v227 = vld [vmem:[%s213 + $0x50] sm:$0xff]
        %v228 = vld [vmem:[%s213 + $0x58] sm:$0xff]
        %v229 = vld [vmem:[%s213 + $0x60] sm:$0xff]
        %v230 = vld [vmem:[%s213 + $0x68] sm:$0xff]
        %v231 = vld [vmem:[%s213 + $0x70] sm:$0xff]
        %v232 = vld [vmem:[%s213 + $0x78] sm:$0xff]
        %v233 = vld [vmem:[%s213 + $0x80] sm:$0xff]
        %v234 = vld [vmem:[%s213 + $0x88] sm:$0xff]
        %v235 = vld [vmem:[%s213 + $0x90] sm:$0xff]
        %v236 = vld [vmem:[%s213 + $0x98] sm:$0xff]
        %v237 = vld [vmem:[%s213 + $0xa0] sm:$0xff]
        %v238 = vld [vmem:[%s213 + $0xa8] sm:$0xff]
        %v239 = vld [vmem:[%s213 + $0xb0] sm:$0xff]
        %v240 = vld [vmem:[%s213 + $0xb8] sm:$0xff]
        %v241 = vld [vmem:[%s213 + $0xc0] sm:$0xff]
        %v242 = vld [vmem:[%s213 + $0xc8] sm:$0xff]
        %v243 = vld [vmem:[%s213 + $0xd0] sm:$0xff]
        %v244 = vld [vmem:[%s213 + $0xd8] sm:$0xff]
        %v245 = vld [vmem:[%s213 + $0xe0] sm:$0xff]
        %v246 = vld [vmem:[%s213 + $0xe8] sm:$0xff]
        %v247 = vld [vmem:[%s213 + $0xf0] sm:$0xff]
        %v248 = vld [vmem:[%s213 + $0xf8] sm:$0xff]
        %v249 = vld [vmem:[%s1] sm:$0xf]
        %v250 = vld [vmem:[%s1 + $0x4] sm:$0xf]
        %v251 = vld [vmem:[%s1 + $0x8] sm:$0xf]
        %v252 = vld [vmem:[%s1 + $0xc] sm:$0xf]
        %v253 = vld [vmem:[%s1 + $0x10] sm:$0xf]
        %v254 = vld [vmem:[%s1 + $0x14] sm:$0xf]
        %v255 = vld [vmem:[%s1 + $0x18] sm:$0xf]
        %v256 = vld [vmem:[%s1 + $0x1c] sm:$0xf]
        %v257 = vld [vmem:[%s1 + $0x20] sm:$0xf]
        %v258 = vld [vmem:[%s1 + $0x24] sm:$0xf]
        %v259 = vld [vmem:[%s1 + $0x28] sm:$0xf]
        %v260 = vld [vmem:[%s1 + $0x2c] sm:$0xf]
        %v261 = vld [vmem:[%s1 + $0x30] sm:$0xf]
        %v262 = vld [vmem:[%s1 + $0x34] sm:$0xf]
        %v263 = vld [vmem:[%s1 + $0x38] sm:$0xf]
        %v264 = vld [vmem:[%s1 + $0x3c] sm:$0xf]
        %v265 = vld [vmem:[%s1 + $0x40] sm:$0xf]
        %v266 = vld [vmem:[%s1 + $0x44] sm:$0xf]
        %v267 = vld [vmem:[%s1 + $0x48] sm:$0xf]
        %v268 = vld [vmem:[%s1 + $0x4c] sm:$0xf]
        %v301 = vunpack.c.l.b16 %v217
        %v302 = vunpack.c.h.b16 %v217
        %v303 = vunpack.c.l.b16 %v218
        %v304 = vunpack.c.h.b16 %v218
        %v305 = vunpack.c.l.b16 %v219
        %v306 = vunpack.c.h.b16 %v219
        %v307 = vunpack.c.l.b16 %v220
        %v308 = vunpack.c.h.b16 %v220
        %v309 = vunpack.c.l.b16 %v221
        %v310 = vunpack.c.h.b16 %v221
        %v311 = vunpack.c.l.b16 %v222
        %v312 = vunpack.c.h.b16 %v222
        %v313 = vunpack.c.l.b16 %v223
        %v314 = vunpack.c.h.b16 %v223
        %v315 = vunpack.c.l.b16 %v224
        %v316 = vunpack.c.h.b16 %v224
        %v317 = vunpack.c.l.b16 %v225
        %v318 = vunpack.c.h.b16 %v225
        %v319 = vunpack.c.l.b16 %v226
        %v320 = vunpack.c.h.b16 %v226
        %v321 = vunpack.c.l.b16 %v227
        %v322 = vunpack.c.h.b16 %v227
        %v323 = vunpack.c.l.b16 %v228
        %v324 = vunpack.c.h.b16 %v228
        %v325 = vunpack.c.l.b16 %v229
        %v326 = vunpack.c.h.b16 %v229
        %v327 = vunpack.c.l.b16 %v230
        %v328 = vunpack.c.h.b16 %v230
        %v329 = vunpack.c.l.b16 %v231
        %v330 = vunpack.c.h.b16 %v231
        %v331 = vunpack.c.l.b16 %v232
        %v332 = vunpack.c.h.b16 %v232
        %v333 = vunpack.c.l.b16 %v233
        %v334 = vunpack.c.h.b16 %v233
        %v335 = vunpack.c.l.b16 %v234
        %v336 = vunpack.c.h.b16 %v234
        %v337 = vunpack.c.l.b16 %v235
        %v338 = vunpack.c.h.b16 %v235
        %v339 = vunpack.c.l.b16 %v236
        %v340 = vunpack.c.h.b16 %v236
        %v341 = vunpack.c.l.b16 %v237
        %v342 = vunpack.c.h.b16 %v237
        %v343 = vunpack.c.l.b16 %v238
        %v344 = vunpack.c.h.b16 %v238
        %v345 = vunpack.c.l.b16 %v239
        %v346 = vunpack.c.h.b16 %v239
        %v347 = vunpack.c.l.b16 %v240
        %v348 = vunpack.c.h.b16 %v240
        %v349 = vunpack.c.l.b16 %v241
        %v350 = vunpack.c.h.b16 %v241
        %v351 = vunpack.c.l.b16 %v242
        %v352 = vunpack.c.h.b16 %v242
        %v353 = vunpack.c.l.b16 %v243
        %v354 = vunpack.c.h.b16 %v243
        %v355 = vunpack.c.l.b16 %v244
        %v356 = vunpack.c.h.b16 %v244
        %v357 = vunpack.c.l.b16 %v245
        %v358 = vunpack.c.h.b16 %v245
        %v359 = vunpack.c.l.b16 %v246
        %v360 = vunpack.c.h.b16 %v246
        %v361 = vunpack.c.l.b16 %v247
        %v362 = vunpack.c.h.b16 %v247
        %v363 = vunpack.c.l.b16 %v248
        %v364 = vunpack.c.h.b16 %v248
        %v365 = vpack.c.b16 %v303, %v301
        %v366 = vpack.c.b16 %v304, %v302
        %v367 = vpack.c.b16 %v307, %v305
        %v368 = vpack.c.b16 %v308, %v306
        %v369 = vpack.c.b16 %v311, %v309
        %v370 = vpack.c.b16 %v312, %v310
        %v371 = vpack.c.b16 %v315, %v313
        %v372 = vpack.c.b16 %v316, %v314
        %v373 = vpack.c.b16 %v319, %v317
        %v374 = vpack.c.b16 %v320, %v318
        %v375 = vpack.c.b16 %v323, %v321
        %v376 = vpack.c.b16 %v324, %v322
        %v377 = vpack.c.b16 %v327, %v325
        %v378 = vpack.c.b16 %v328, %v326
        %v379 = vpack.c.b16 %v331, %v329
        %v380 = vpack.c.b16 %v332, %v330
        %v381 = vpack.c.b16 %v335, %v333
        %v382 = vpack.c.b16 %v336, %v334
        %v383 = vpack.c.b16 %v339, %v337
        %v384 = vpack.c.b16 %v340, %v338
        %v385 = vpack.c.b16 %v343, %v341
        %v386 = vpack.c.b16 %v344, %v342
        %v387 = vpack.c.b16 %v347, %v345
        %v388 = vpack.c.b16 %v348, %v346
        %v389 = vpack.c.b16 %v351, %v349
        %v390 = vpack.c.b16 %v352, %v350
        %v391 = vpack.c.b16 %v355, %v353
        %v392 = vpack.c.b16 %v356, %v354
        %v393 = vpack.c.b16 %v359, %v357
        %v394 = vpack.c.b16 %v360, %v358
        %v395 = vpack.c.b16 %v363, %v361
        %v396 = vpack.c.b16 %v364, %v362
        %v433 = vunpack.c.l.b16 %v249
        %v434 = vunpack.c.l.b16 %v250
        %v435 = vunpack.c.l.b16 %v251
        %v436 = vunpack.c.l.b16 %v252
        %v437 = vunpack.c.l.b16 %v253
        %v438 = vunpack.c.l.b16 %v254
        %v439 = vunpack.c.l.b16 %v255
        %v440 = vunpack.c.l.b16 %v256
        %v441 = vunpack.c.l.b16 %v257
        %v442 = vunpack.c.l.b16 %v258
        %v443 = vunpack.c.l.b16 %v259
        %v444 = vunpack.c.l.b16 %v260
        %v445 = vunpack.c.l.b16 %v261
        %v446 = vunpack.c.l.b16 %v262
        %v447 = vunpack.c.l.b16 %v263
        %v448 = vunpack.c.l.b16 %v264
        %v449 = vunpack.c.l.b16 %v265
        %v450 = vunpack.c.l.b16 %v266
        %v451 = vunpack.c.l.b16 %v267
        %v452 = vunpack.c.l.b16 %v268
        %v453 = vpack.c.b16 %v434, %v433
        %v454 = vpack.c.b16 %v436, %v435
        %v455 = vpack.c.b16 %v438, %v437
        %v456 = vpack.c.b16 %v440, %v439
        %v457 = vpack.c.b16 %v442, %v441
        %v458 = vpack.c.b16 %v444, %v443
        %v459 = vpack.c.b16 %v446, %v445
        %v460 = vpack.c.b16 %v448, %v447
        %v461 = vpack.c.b16 %v450, %v449
        %v462 = vpack.c.b16 %v452, %v451
        %vm473 = vcmask 261120
        %v475 = vsel %vm473, %v366, 0
        %v478 = vsel %vm473, %v368, 0
        %v481 = vsel %vm473, %v370, 0
        %v484 = vsel %vm473, %v372, 0
        %v487 = vsel %vm473, %v374, 0
        %v490 = vsel %vm473, %v376, 0
        %v493 = vsel %vm473, %v378, 0
        %v496 = vsel %vm473, %v380, 0
        %v499 = vsel %vm473, %v382, 0
        %v502 = vsel %vm473, %v384, 0
        %v505 = vsel %vm473, %v386, 0
        %v508 = vsel %vm473, %v388, 0
        %v511 = vsel %vm473, %v390, 0
        %v514 = vsel %vm473, %v392, 0
        %v517 = vsel %vm473, %v394, 0
        %v520 = vsel %vm473, %v396, 0
        %522 = vmatpush.bf16.msra.mxu0 %v460
        %523 = vmatpush.bf16.msra.mxu0 %v459
        %524 = vmatpush.bf16.msra.mxu0 %v458
        %525 = vmatpush.bf16.msra.mxu0 %v457
        %526 = vmatpush.bf16.msra.mxu0 %v456
        %527 = vmatpush.bf16.msra.mxu0 %v455
        %528 = vmatpush.bf16.msra.mxu0 %v454
        %529 = vmatpush.bf16.msra.mxu0 %v453
        %530 = vmatmul.bf16.gmra.mxu0 %v365
        %v531 = vpop.f32.mrf.mxu0
        %v532 = vadd.f32 0.0, %v531
        %v533 = vpop.f32.mrf.mxu0
        %v534 = vadd.f32 0.0, %v533
        %535 = vmatmul.bf16.gmra.mxu0 %v367
        %v536 = vpop.f32.mrf.mxu0
        %v537 = vadd.f32 0.0, %v536
        %v538 = vpop.f32.mrf.mxu0
        %v539 = vadd.f32 0.0, %v538
        %540 = vmatmul.bf16.gmra.mxu0 %v369
        %v541 = vpop.f32.mrf.mxu0
        %v542 = vadd.f32 0.0, %v541
        %v543 = vpop.f32.mrf.mxu0
        %v544 = vadd.f32 0.0, %v543
        %545 = vmatmul.bf16.gmra.mxu0 %v371
        %v546 = vpop.f32.mrf.mxu0
        %v547 = vadd.f32 0.0, %v546
        %v548 = vpop.f32.mrf.mxu0
        %v549 = vadd.f32 0.0, %v548
        %550 = vmatmul.bf16.gmra.mxu0 %v373
        %v551 = vpop.f32.mrf.mxu0
        %v552 = vadd.f32 0.0, %v551
        %v553 = vpop.f32.mrf.mxu0
        %v554 = vadd.f32 0.0, %v553
        %555 = vmatmul.bf16.gmra.mxu0 %v375
        %v556 = vpop.f32.mrf.mxu0
        %v557 = vadd.f32 0.0, %v556
        %v558 = vpop.f32.mrf.mxu0
        %v559 = vadd.f32 0.0, %v558
        %560 = vmatmul.bf16.gmra.mxu0 %v377
        %v561 = vpop.f32.mrf.mxu0
        %v562 = vadd.f32 0.0, %v561
        %v563 = vpop.f32.mrf.mxu0
        %v564 = vadd.f32 0.0, %v563
        %565 = vmatmul.bf16.gmra.mxu0 %v379
        %v566 = vpop.f32.mrf.mxu0
        %v567 = vadd.f32 0.0, %v566
        %v568 = vpop.f32.mrf.mxu0
        %v569 = vadd.f32 0.0, %v568
        %570 = vmatmul.bf16.gmra.mxu0 %v381
        %v571 = vpop.f32.mrf.mxu0
        %v572 = vadd.f32 0.0, %v571
        %v573 = vpop.f32.mrf.mxu0
        %v574 = vadd.f32 0.0, %v573
        %575 = vmatmul.bf16.gmra.mxu0 %v383
        %v576 = vpop.f32.mrf.mxu0
        %v577 = vadd.f32 0.0, %v576
        %v578 = vpop.f32.mrf.mxu0
        %v579 = vadd.f32 0.0, %v578
        %580 = vmatmul.bf16.gmra.mxu0 %v385
        %v581 = vpop.f32.mrf.mxu0
        %v582 = vadd.f32 0.0, %v581
        %v583 = vpop.f32.mrf.mxu0
        %v584 = vadd.f32 0.0, %v583
        %585 = vmatmul.bf16.gmra.mxu0 %v387
        %v586 = vpop.f32.mrf.mxu0
        %v587 = vadd.f32 0.0, %v586
        %v588 = vpop.f32.mrf.mxu0
        %v589 = vadd.f32 0.0, %v588
        %590 = vmatmul.bf16.gmra.mxu0 %v389
        %v591 = vpop.f32.mrf.mxu0
        %v592 = vadd.f32 0.0, %v591
        %v593 = vpop.f32.mrf.mxu0
        %v594 = vadd.f32 0.0, %v593
        %595 = vmatmul.bf16.gmra.mxu0 %v391
        %v596 = vpop.f32.mrf.mxu0
        %v597 = vadd.f32 0.0, %v596
        %v598 = vpop.f32.mrf.mxu0
        %v599 = vadd.f32 0.0, %v598
        %600 = vmatmul.bf16.gmra.mxu0 %v393
        %v601 = vpop.f32.mrf.mxu0
        %v602 = vadd.f32 0.0, %v601
        %v603 = vpop.f32.mrf.mxu0
        %v604 = vadd.f32 0.0, %v603
        %605 = vmatmul.bf16.gmra.mxu0 %v395
        %v606 = vpop.f32.mrf.mxu0
        %v607 = vadd.f32 0.0, %v606
        %v608 = vpop.f32.mrf.mxu0
        %v609 = vadd.f32 0.0, %v608
        %610 = vdwg.mxu0
        %611 = vmatpush.bf16.msra.mxu0 0
        %612 = vmatpush.bf16.msra.mxu0 0
        %613 = vmatpush.bf16.msra.mxu0 0
        %614 = vmatpush.bf16.msra.mxu0 0
        %615 = vmatpush.bf16.msra.mxu0 0
        %616 = vmatpush.bf16.msra.mxu0 0
        %617 = vmatpush.bf16.msra.mxu0 %v462
        %618 = vmatpush.bf16.msra.mxu0 %v461
        %619 = vmatmul.bf16.gmra.mxu0 %v475
        %v620 = vpop.f32.mrf.mxu0
        %v621 = vadd.f32 %v532, %v620
        %v622 = vpop.f32.mrf.mxu0
        %v623 = vadd.f32 %v534, %v622
        %624 = vmatmul.bf16.gmra.mxu0 %v478
        %v625 = vpop.f32.mrf.mxu0
        %v626 = vadd.f32 %v537, %v625
        %v627 = vpop.f32.mrf.mxu0
        %v628 = vadd.f32 %v539, %v627
        %629 = vmatmul.bf16.gmra.mxu0 %v481
        %v630 = vpop.f32.mrf.mxu0
        %v631 = vadd.f32 %v542, %v630
        %v632 = vpop.f32.mrf.mxu0
        %v633 = vadd.f32 %v544, %v632
        %634 = vmatmul.bf16.gmra.mxu0 %v484
        %v635 = vpop.f32.mrf.mxu0
        %v636 = vadd.f32 %v547, %v635
        %v637 = vpop.f32.mrf.mxu0
        %v638 = vadd.f32 %v549, %v637
        %639 = vmatmul.bf16.gmra.mxu0 %v487
        %v640 = vpop.f32.mrf.mxu0
        %v641 = vadd.f32 %v552, %v640
        %v642 = vpop.f32.mrf.mxu0
        %v643 = vadd.f32 %v554, %v642
        %644 = vmatmul.bf16.gmra.mxu0 %v490
        %v645 = vpop.f32.mrf.mxu0
        %v646 = vadd.f32 %v557, %v645
        %v647 = vpop.f32.mrf.mxu0
        %v648 = vadd.f32 %v559, %v647
        %649 = vmatmul.bf16.gmra.mxu0 %v493
        %v650 = vpop.f32.mrf.mxu0
        %v651 = vadd.f32 %v562, %v650
        %v652 = vpop.f32.mrf.mxu0
        %v653 = vadd.f32 %v564, %v652
        %654 = vmatmul.bf16.gmra.mxu0 %v496
        %v655 = vpop.f32.mrf.mxu0
        %v656 = vadd.f32 %v567, %v655
        %v657 = vpop.f32.mrf.mxu0
        %v658 = vadd.f32 %v569, %v657
        %659 = vmatmul.bf16.gmra.mxu0 %v499
        %v660 = vpop.f32.mrf.mxu0
        %v661 = vadd.f32 %v572, %v660
        %v662 = vpop.f32.mrf.mxu0
        %v663 = vadd.f32 %v574, %v662
        %664 = vmatmul.bf16.gmra.mxu0 %v502
        %v665 = vpop.f32.mrf.mxu0
        %v666 = vadd.f32 %v577, %v665
        %v667 = vpop.f32.mrf.mxu0
        %v668 = vadd.f32 %v579, %v667
        %669 = vmatmul.bf16.gmra.mxu0 %v505
        %v670 = vpop.f32.mrf.mxu0
        %v671 = vadd.f32 %v582, %v670
        %v672 = vpop.f32.mrf.mxu0
        %v673 = vadd.f32 %v584, %v672
        %674 = vmatmul.bf16.gmra.mxu0 %v508
        %v675 = vpop.f32.mrf.mxu0
        %v676 = vadd.f32 %v587, %v675
        %v677 = vpop.f32.mrf.mxu0
        %v678 = vadd.f32 %v589, %v677
        %679 = vmatmul.bf16.gmra.mxu0 %v511
        %v680 = vpop.f32.mrf.mxu0
        %v681 = vadd.f32 %v592, %v680
        %v682 = vpop.f32.mrf.mxu0
        %v683 = vadd.f32 %v594, %v682
        %684 = vmatmul.bf16.gmra.mxu0 %v514
        %v685 = vpop.f32.mrf.mxu0
        %v686 = vadd.f32 %v597, %v685
        %v687 = vpop.f32.mrf.mxu0
        %v688 = vadd.f32 %v599, %v687
        %689 = vmatmul.bf16.gmra.mxu0 %v517
        %v690 = vpop.f32.mrf.mxu0
        %v691 = vadd.f32 %v602, %v690
        %v692 = vpop.f32.mrf.mxu0
        %v693 = vadd.f32 %v604, %v692
        %694 = vmatmul.bf16.gmra.mxu0 %v520
        %v695 = vpop.f32.mrf.mxu0
        %v696 = vadd.f32 %v607, %v695
        %v697 = vpop.f32.mrf.mxu0
        %v698 = vadd.f32 %v609, %v697
        %699 = vdwg.mxu0
        %v700 = vpack.c.bf16 %v621, %v621
        %v701 = vpack.c.bf16 %v623, %v623
        %v702 = vpack.c.bf16 %v626, %v626
        %v703 = vpack.c.bf16 %v628, %v628
        %v704 = vpack.c.bf16 %v631, %v631
        %v705 = vpack.c.bf16 %v633, %v633
        %v706 = vpack.c.bf16 %v636, %v636
        %v707 = vpack.c.bf16 %v638, %v638
        %v708 = vpack.c.bf16 %v641, %v641
        %v709 = vpack.c.bf16 %v643, %v643
        %v710 = vpack.c.bf16 %v646, %v646
        %v711 = vpack.c.bf16 %v648, %v648
        %v712 = vpack.c.bf16 %v651, %v651
        %v713 = vpack.c.bf16 %v653, %v653
        %v714 = vpack.c.bf16 %v656, %v656
        %v715 = vpack.c.bf16 %v658, %v658
        %v716 = vpack.c.bf16 %v661, %v661
        %v717 = vpack.c.bf16 %v663, %v663
        %v718 = vpack.c.bf16 %v666, %v666
        %v719 = vpack.c.bf16 %v668, %v668
        %v720 = vpack.c.bf16 %v671, %v671
        %v721 = vpack.c.bf16 %v673, %v673
        %v722 = vpack.c.bf16 %v676, %v676
        %v723 = vpack.c.bf16 %v678, %v678
        %v724 = vpack.c.bf16 %v681, %v681
        %v725 = vpack.c.bf16 %v683, %v683
        %v726 = vpack.c.bf16 %v686, %v686
        %v727 = vpack.c.bf16 %v688, %v688
        %v728 = vpack.c.bf16 %v691, %v691
        %v729 = vpack.c.bf16 %v693, %v693
        %v730 = vpack.c.bf16 %v696, %v696
        %v731 = vpack.c.bf16 %v698, %v698
        %732 = vst [vmem:[%s196] sm:$0xf] %v700
        %733 = vst [vmem:[%s196 + $0x4] sm:$0xf] %v701
        %734 = vst [vmem:[%s196 + $0x8] sm:$0xf] %v702
        %735 = vst [vmem:[%s196 + $0xc] sm:$0xf] %v703
        %736 = vst [vmem:[%s196 + $0x10] sm:$0xf] %v704
        %737 = vst [vmem:[%s196 + $0x14] sm:$0xf] %v705
        %738 = vst [vmem:[%s196 + $0x18] sm:$0xf] %v706
        %739 = vst [vmem:[%s196 + $0x1c] sm:$0xf] %v707
        %740 = vst [vmem:[%s196 + $0x20] sm:$0xf] %v708
        %741 = vst [vmem:[%s196 + $0x24] sm:$0xf] %v709
        %742 = vst [vmem:[%s196 + $0x28] sm:$0xf] %v710
        %743 = vst [vmem:[%s196 + $0x2c] sm:$0xf] %v711
        %744 = vst [vmem:[%s196 + $0x30] sm:$0xf] %v712
        %745 = vst [vmem:[%s196 + $0x34] sm:$0xf] %v713
        %746 = vst [vmem:[%s196 + $0x38] sm:$0xf] %v714
        %747 = vst [vmem:[%s196 + $0x3c] sm:$0xf] %v715
        %748 = vst [vmem:[%s196 + $0x40] sm:$0xf] %v716
        %749 = vst [vmem:[%s196 + $0x44] sm:$0xf] %v717
        %750 = vst [vmem:[%s196 + $0x48] sm:$0xf] %v718
        %751 = vst [vmem:[%s196 + $0x4c] sm:$0xf] %v719
        %752 = vst [vmem:[%s196 + $0x50] sm:$0xf] %v720
        %753 = vst [vmem:[%s196 + $0x54] sm:$0xf] %v721
        %754 = vst [vmem:[%s196 + $0x58] sm:$0xf] %v722
        %755 = vst [vmem:[%s196 + $0x5c] sm:$0xf] %v723
        %756 = vst [vmem:[%s196 + $0x60] sm:$0xf] %v724
        %757 = vst [vmem:[%s196 + $0x64] sm:$0xf] %v725
        %758 = vst [vmem:[%s196 + $0x68] sm:$0xf] %v726
        %759 = vst [vmem:[%s196 + $0x6c] sm:$0xf] %v727
        %760 = vst [vmem:[%s196 + $0x70] sm:$0xf] %v728
        %761 = vst [vmem:[%s196 + $0x74] sm:$0xf] %v729
        %762 = vst [vmem:[%s196 + $0x78] sm:$0xf] %v730
        %763 = vst [vmem:[%s196 + $0x7c] sm:$0xf] %v731
        %v764 = vadd.f32 %v621, %v623
        %v765 = vadd.f32 %v764, %v626
        %v766 = vadd.f32 %v765, %v628
        %v767 = vadd.f32 %v766, %v631
        %v768 = vadd.f32 %v767, %v633
        %v769 = vadd.f32 %v768, %v636
        %v770 = vadd.f32 %v769, %v638
        %v771 = vadd.f32 %v770, %v641
        %v772 = vadd.f32 %v771, %v643
        %v773 = vadd.f32 %v772, %v646
        %v774 = vadd.f32 %v773, %v648
        %v775 = vadd.f32 %v774, %v651
        %v776 = vadd.f32 %v775, %v653
        %v777 = vadd.f32 %v776, %v656
        %v778 = vadd.f32 %v777, %v658
        %v779 = vadd.f32 %v778, %v661
        %v780 = vadd.f32 %v779, %v663
        %v781 = vadd.f32 %v780, %v666
        %v782 = vadd.f32 %v781, %v668
        %v783 = vadd.f32 %v782, %v671
        %v784 = vadd.f32 %v783, %v673
        %v785 = vadd.f32 %v784, %v676
        %v786 = vadd.f32 %v785, %v678
        %v787 = vadd.f32 %v786, %v681
        %v788 = vadd.f32 %v787, %v683
        %v789 = vadd.f32 %v788, %v686
        %v790 = vadd.f32 %v789, %v688
        %v791 = vadd.f32 %v790, %v691
        %v792 = vadd.f32 %v791, %v693
        %v793 = vadd.f32 %v792, %v696
        %v794 = vadd.f32 %v793, %v698
        %v795 = vrot.slane %v794, 4
        %v796 = vadd.f32 %v794, %v795
        %v797 = vrot.slane %v796, 2
        %v798 = vadd.f32 %v796, %v797
        %v799 = vrot.slane %v798, 1
        %v800 = vadd.f32 %v798, %v799
        %v801 = vmul.f32 %v621, %v621
        %v802 = vmul.f32 %v623, %v623
        %v803 = vmul.f32 %v626, %v626
        %v804 = vmul.f32 %v628, %v628
        %v805 = vmul.f32 %v631, %v631
        %v806 = vmul.f32 %v633, %v633
        %v807 = vmul.f32 %v636, %v636
        %v808 = vmul.f32 %v638, %v638
        %v809 = vmul.f32 %v641, %v641
        %v810 = vmul.f32 %v643, %v643
        %v811 = vmul.f32 %v646, %v646
        %v812 = vmul.f32 %v648, %v648
        %v813 = vmul.f32 %v651, %v651
        %v814 = vmul.f32 %v653, %v653
        %v815 = vmul.f32 %v656, %v656
        %v816 = vmul.f32 %v658, %v658
        %v817 = vmul.f32 %v661, %v661
        %v818 = vmul.f32 %v663, %v663
        %v819 = vmul.f32 %v666, %v666
        %v820 = vmul.f32 %v668, %v668
        %v821 = vmul.f32 %v671, %v671
        %v822 = vmul.f32 %v673, %v673
        %v823 = vmul.f32 %v676, %v676
        %v824 = vmul.f32 %v678, %v678
        %v825 = vmul.f32 %v681, %v681
        %v826 = vmul.f32 %v683, %v683
        %v827 = vmul.f32 %v686, %v686
        %v828 = vmul.f32 %v688, %v688
        %v829 = vmul.f32 %v691, %v691
        %v830 = vmul.f32 %v693, %v693
        %v831 = vmul.f32 %v696, %v696
        %v832 = vmul.f32 %v698, %v698
        %v833 = vadd.f32 %v801, %v802
        %v834 = vadd.f32 %v833, %v803
        %v835 = vadd.f32 %v834, %v804
        %v836 = vadd.f32 %v835, %v805
        %v837 = vadd.f32 %v836, %v806
        %v838 = vadd.f32 %v837, %v807
        %v839 = vadd.f32 %v838, %v808
        %v840 = vadd.f32 %v839, %v809
        %v841 = vadd.f32 %v840, %v810
        %v842 = vadd.f32 %v841, %v811
        %v843 = vadd.f32 %v842, %v812
        %v844 = vadd.f32 %v843, %v813
        %v845 = vadd.f32 %v844, %v814
        %v846 = vadd.f32 %v845, %v815
        %v847 = vadd.f32 %v846, %v816
        %v848 = vadd.f32 %v847, %v817
        %v849 = vadd.f32 %v848, %v818
        %v850 = vadd.f32 %v849, %v819
        %v851 = vadd.f32 %v850, %v820
        %v852 = vadd.f32 %v851, %v821
        %v853 = vadd.f32 %v852, %v822
        %v854 = vadd.f32 %v853, %v823
        %v855 = vadd.f32 %v854, %v824
        %v856 = vadd.f32 %v855, %v825
        %v857 = vadd.f32 %v856, %v826
        %v858 = vadd.f32 %v857, %v827
        %v859 = vadd.f32 %v858, %v828
        %v860 = vadd.f32 %v859, %v829
        %v861 = vadd.f32 %v860, %v830
        %v862 = vadd.f32 %v861, %v831
        %v863 = vadd.f32 %v862, %v832
        %v864 = vrot.slane %v863, 4
        %v865 = vadd.f32 %v863, %v864
        %v866 = vrot.slane %v865, 2
        %v867 = vadd.f32 %v865, %v866
        %v868 = vrot.slane %v867, 1
        %v869 = vadd.f32 %v867, %v868
        %v872 = vrot.slane %v869, 7
        %vm873 = vcmask 1040384
        %v874 = vsel %vm873, %v800, %v872
        %v876 = vlaneseq
        %vm877 = vcmp.ge.s32.totalorder %v876, 0
        %vm878 = vcmp.lt.s32.totalorder %v876, 256
        %vm879 = vmand %vm877, %vm878
        %880 = vst.msk [vmem:[%s203] sm:$0x3] %vm879, %v874
        %s881 = sand.u32 %s92, 1
        %s882 = scalar_lea.sflag [#allocation3], %s881
        %s883 = sand.u32 %s92, 1
        %s884 = smul.addr %s883, 128
        %s885 = scalar_lea.vmem [#allocation2], %s884
        %s886 = sand.u32 %s120, 1
        %s887 = scalar_lea.sflag [#allocation5], %s886
        %s888 = sand.u32 %s120, 1
        %s889 = smul.addr %s888, 2
        %s890 = scalar_lea.vmem [#allocation4], %s889
        // Predicated region
        $region29: #{tpu_custom_call.1} parent=27 // pred_check
          %p891 = pneg %p102
        $region30: #{tpu_custom_call.1} parent=27 // pred_check_branch
          %893 = sbr.rel (%p891) target = $region32
        $region31: #{tpu_custom_call.1} parent=27 // pred_region
          %s894 = smul.u32 32, %s26
          %896 = vsyncadd %s882, 0
          %s897 = smul.addr %s25, 32
          %s898 = sadd.s32 %s894, %s897
          %s899 = smul.addr %s898, 4
          %s900 = scalar_lea.hbm %s2, %s899
          %s901 = sshll.u32 %s885, 4
          %s902 = int_to_ptr.vmem [resolvable:$true] %s901
          %s903 = sshll.u32 %s900, 4
          %s904 = int_to_ptr.hbm [resolvable:$true] %s903
          %909 = dma.vmem_to_hbm [thread:$0]  %s902, 2048, %s904, %s882, 64, 64, 4
        $region32: #{tpu_custom_call.1} parent=27 // pred_fallthru
          _
        // Predicated region
        $region33: #{tpu_custom_call.1} parent=27 // pred_check
          %p910 = pneg %p130
        $region34: #{tpu_custom_call.1} parent=27 // pred_check_branch
          %912 = sbr.rel (%p910) target = $region36
        $region35: #{tpu_custom_call.1} parent=27 // pred_region
          %914 = vsyncadd %s887, 0
          %s915 = smul.addr %s26, 2
          %s916 = smul.addr %s25, 2
          %s917 = sadd.s32 %s915, %s916
          %s918 = scalar_lea.hbm %s3, %s917
          %s920 = sshll.u32 %s890, 4
          %s921 = int_to_ptr.vmem [resolvable:$true] %s920
          %s922 = sshll.u32 %s918, 4
          %s923 = int_to_ptr.hbm [resolvable:$true] %s922
          %925 = dma.vmem_to_hbm [thread:$0]  %s921, 32, %s923, %s887
        $region36: #{tpu_custom_call.1} parent=27 // pred_fallthru
          _
      $region28: #{tpu_custom_call.1} parent=5 // pred_fallthru
        _
      %p926 = scmp.le.s32.totalorder 2, %s16
      // Predicated region
      $region37: #{tpu_custom_call.1} parent=5 // pred_check
        %p927 = pneg %p926
      $region38: #{tpu_custom_call.1} parent=5 // pred_check_branch
        %929 = sbr.rel (%p927) target = $region40
      $region39: #{tpu_custom_call.1} parent=5 // pred_region
        %s930 = ssub.s32 %s16, 2
        // Predicated region
        $region41: #{tpu_custom_call.1} parent=39 // pred_check
          %p931 = pneg %p108
        $region42: #{tpu_custom_call.1} parent=39 // pred_check_branch
          %933 = sbr.rel (%p931) target = $region44
        $region43: #{tpu_custom_call.1} parent=39 // pred_region
          %s934 = sand.u32 %s93, 1
          %s935 = scalar_lea.sflag [#allocation3], %s934
          %s936 = sand.u32 %s93, 1
          %s937 = smul.addr %s936, 128
          %s938 = scalar_lea.vmem [#allocation2], %s937
          %940 = dma.done %s935, 2048
        $region44: #{tpu_custom_call.1} parent=39 // pred_fallthru
          _
        // Predicated region
        $region45: #{tpu_custom_call.1} parent=39 // pred_check
          %p941 = pneg %p136
        $region46: #{tpu_custom_call.1} parent=39 // pred_check_branch
          %943 = sbr.rel (%p941) target = $region48
        $region47: #{tpu_custom_call.1} parent=39 // pred_region
          %s944 = sand.u32 %s121, 1
          %s945 = scalar_lea.sflag [#allocation5], %s944
          %s946 = sand.u32 %s121, 1
          %s947 = smul.addr %s946, 2
          %s948 = scalar_lea.vmem [#allocation4], %s947
          %950 = dma.done %s945, 32
        $region48: #{tpu_custom_call.1} parent=39 // pred_fallthru
          _
      $region40: #{tpu_custom_call.1} parent=5 // pred_fallthru
        _
    $region6: #{tpu_custom_call.1} parent=1 // loop_footer
      %s20 = sadd.s32 1, %s16
    $region7: #{tpu_custom_call.1} parent=1 // loop_footer_branch
      %15 = sbr.rel target = $region3
    $region8: #{tpu_custom_call.1} parent=1 // loop_exit
      _
    %951 = vsyncpa [#allocation3], 1
    %s952 = scalar_lea.sflag [#allocation3], 1
    %953 = vsyncpa %s952, 1
    %954 = vsyncpa [#allocation5], 1
    %s955 = scalar_lea.sflag [#allocation5], 1
    %956 = vsyncpa %s955, 1

</llo_original>
